<compile_context>
chip_gen: v5e
topology: v5e:2x2
jax: 0.10.0
libtpu: 0.0.40
codegen_flags: <defaults>
</compile_context>

<pallas_src>
import jax
import jax.numpy as jnp
from jax.experimental import pallas as pl
from jax.experimental.pallas import tpu as pltpu

K = 3          # depthwise kernel size
LANES = 128    # TPU lane width
SUBLANES = 8   # TPU sublane width


def _round_up(x, m):
    return (x + m - 1) // m * m


def _cdiv(a, b):
    return -(-a // b)


def _dws_kernel(xm_ref, xh_ref, w_ref, sb_ref, o_ref):
    # xm_ref : (1, TH, Wp, Cin)    main TH padded rows of the strip (bf16)
    # xh_ref : (1, 2,  Wp, Cin)    2-row bottom halo (bf16)
    # w_ref  : (K*K*Cin, Cout_p)   combined dw*pw im2col weights (bf16)
    # sb_ref : (2, Cout_p)         row 0: folded BN scale, row 1: folded BN bias (f32)
    # o_ref  : (1, TH, W, Cout_p)
    th, w_out, cout_p = o_ref.shape[1], o_ref.shape[2], o_ref.shape[3]
    cin = xm_ref.shape[3]

    # Assemble the (TH+2)-row halo strip (already bf16 -- cast happens in the wrapper).
    xs = jnp.concatenate([xm_ref[0], xh_ref[0]], axis=0)          # (TH+2, Wp, Cin)

    # im2col: 9 shifted windows concatenated along lanes -> one MXU dot with a
    # 9*Cin-deep contraction and f32 accumulation entirely inside the MXU.
    cols = []
    for kh in range(K):
        for kw in range(K):
            cols.append(xs[kh:kh + th, kw:kw + w_out, :])
    lhs = jnp.concatenate(cols, axis=-1).reshape(th * w_out, K * K * cin)
    acc = jnp.dot(lhs, w_ref[...], preferred_element_type=jnp.float32)

    # Epilogue (f32): BN scale + bias, then Swish; lane-dense (Cout_p % 128 == 0) store.
    y = acc * sb_ref[0:1, :] + sb_ref[1:2, :]
    y = y * jax.nn.sigmoid(y)
    o_ref[0] = y.reshape(th, w_out, cout_p).astype(o_ref.dtype)


def _vmem_budget():
    """(per-step working-set budget, vmem_limit_bytes) for the current TPU generation."""
    try:
        cap = int(pltpu.get_tpu_info().vmem_capacity_bytes)
    except Exception:
        cap = 64 << 20                       # be conservative (v7x per-TC size)
    if cap >= (96 << 20):                    # v5e / v6e: 128 MiB physical VMEM
        return 14 << 20, 64 << 20
    return 20 << 20, 48 << 20                # v7x: 64 MiB per TensorCore


def _pick_rows_per_strip(w8, wp8, cin, cout_p, out_bytes, budget_bytes, max_rows=512):
    """Largest even TH whose per-step working set fits the budget (double-buffered I/O)."""
    cin_l = _round_up(cin, LANES)            # lane padding of the small-Cin input strip
    kcin_l = _round_up(K * K * cin, LANES)   # lane padding of the im2col LHS

    def cost(th):
        in_strip = th * wp8 * cin_l * 2            # bf16 main block
        halo = 2 * wp8 * cin_l * 2                 # bf16 halo block
        out_strip = th * w8 * cout_p * out_bytes
        tmp = (th + 2) * wp8 * cin_l * 2           # concatenated strip
        tmp += th * w8 * kcin_l * 2                # im2col LHS (bf16)
        tmp += 2 * th * w8 * cout_p * 4            # f32 matmul result + epilogue temp
        return 2 * (in_strip + halo + out_strip) + tmp

    best = 2
    for th in range(2, max_rows + 1, 2):
        if cost(th) <= budget_bytes:
            best = th
    return best


def dws_conv2d(x_nchw, dw_w, pw_w, gamma, beta, run_mean, run_var,
               eps=1e-3, rows_per_strip=None):
    """x_nchw: (N, Cin, H, W); dw_w: (Cin,1,K,K); pw_w: (Cout,Cin,1,1) (torch layouts)."""
    N, Cin, H, W = x_nchw.shape
    Cout = pw_w.shape[0]
    Cout_p = _round_up(Cout, LANES)
    W8 = _round_up(W, SUBLANES)
    Wp8 = W8 + 2
    out_dtype = x_nchw.dtype
    out_bytes = jnp.dtype(out_dtype).itemsize

    budget, vmem_limit = _vmem_budget()
    if rows_per_strip is None:
        th_cap = _pick_rows_per_strip(W8, Wp8, Cin, Cout_p, out_bytes, budget)
    else:
        th_cap = max(2, (int(rows_per_strip) // 2) * 2)
    # Balance strips (grid = cdiv(H, TH), last strip zero-padded) and keep TH even so the
    # 2-row halo can be fetched as a single Blocked(2) block.
    n_strips = _cdiv(H, th_cap)
    TH = _round_up(_cdiv(H, n_strips), 2)
    n_strips = _cdiv(H, TH)
    H_pad = n_strips * TH

    # ---- fold BN (inference): y = conv * scale + bias, applied in the f32 epilogue ----
    inv_std = 1.0 / jnp.sqrt(run_var.astype(jnp.float32) + eps)
    scale = gamma.astype(jnp.float32) * inv_std
    bias = beta.astype(jnp.float32) - run_mean.astype(jnp.float32) * scale
    sb = jnp.stack([jnp.pad(scale, (0, Cout_p - Cout)),
                    jnp.pad(bias, (0, Cout_p - Cout))], axis=0)          # (2, Cout_p) f32

    # ---- fold depthwise * pointwise into one im2col weight (exact in f32, cast bf16) ----
    dw = jnp.transpose(dw_w[:, 0, :, :], (1, 2, 0)).reshape(K * K, Cin)  # (9, Cin)
    pw = jnp.transpose(pw_w[:, :, 0, 0], (1, 0)).astype(jnp.float32)     # (Cin, Cout)
    wc = dw.astype(jnp.float32)[:, :, None] * pw[None, :, :]             # (9, Cin, Cout)
    wc = wc.reshape(K * K * Cin, Cout)
    wc = jnp.pad(wc, ((0, 0), (0, Cout_p - Cout))).astype(jnp.bfloat16)  # (9*Cin, Cout_p)

    # ---- NCHW -> NHWC, cast to bf16, SAME pad (+ align H to TH, W to 8) --------------
    x_nhwc = jnp.transpose(x_nchw, (0, 2, 3, 1)).astype(jnp.bfloat16)
    xp = jnp.pad(x_nhwc, ((0, 0), (1, H_pad - H + 1), (1, W8 - W + 1), (0, 0)))

    out_p = pl.pallas_call(
        _dws_kernel,
        out_shape=jax.ShapeDtypeStruct((N, H_pad, W8, Cout_p), out_dtype),
        grid_spec=pltpu.PrefetchScalarGridSpec(
            num_scalar_prefetch=0,
            grid=(N, n_strips),
            in_specs=[
                # main TH padded rows of the strip
                pl.BlockSpec((1, TH, Wp8, Cin), lambda n, i: (n, i, 0, 0)),
                # 2-row bottom halo as ONE block: TH is even, so block index
                # (i+1)*TH//2 covers padded rows [i*TH + TH, i*TH + TH + 2)
                pl.BlockSpec((1, 2, Wp8, Cin), lambda n, i: (n, (i + 1) * (TH // 2), 0, 0)),
                pl.BlockSpec((K * K * Cin, Cout_p), lambda n, i: (0, 0)),
                pl.BlockSpec((2, Cout_p), lambda n, i: (0, 0)),
            ],
            out_specs=pl.BlockSpec((1, TH, W8, Cout_p), lambda n, i: (n, i, 0, 0)),
        ),
        compiler_params=pltpu.CompilerParams(
            # two parallel axes -> both v7x TensorCores get work even at N=1
            dimension_semantics=("parallel", "parallel"),
            vmem_limit_bytes=vmem_limit,
        ),
    )(xp, xp, wc, sb)

    # Drop alignment / lane padding and return NCHW to match the PyTorch module.
    return jnp.transpose(out_p[:, :H, :W, :Cout], (0, 3, 1, 2))


def _reference(x_nchw, dw_w, pw_w, gamma, beta, run_mean, run_var, eps=1e-3):
    """Pure-JAX f32 reference (lax convs) for correctness checking."""
    x = x_nchw.astype(jnp.float32)
    Cin = x.shape[1]
    y = jax.lax.conv_general_dilated(
        x, dw_w.astype(jnp.float32), window_strides=(1, 1), padding=((1, 1), (1, 1)),
        dimension_numbers=("NCHW", "OIHW", "NCHW"), feature_group_count=Cin)
    y = jax.lax.conv_general_dilated(
        y, pw_w.astype(jnp.float32), window_strides=(1, 1), padding="VALID",
        dimension_numbers=("NCHW", "OIHW", "NCHW"))
    s = gamma / jnp.sqrt(run_var + eps)
    b = beta - run_mean * s
    y = y * s[None, :, None, None] + b[None, :, None, None]
    return y * jax.nn.sigmoid(y)


if __name__ == "__main__":
    key = jax.random.PRNGKey(0)
    k_x, k_dw, k_pw, k_g, k_b, k_m, k_v = jax.random.split(key, 7)

    N, Cin, Cout, H, W = 2, 4, 8, 16, 16

    x = jax.random.normal(k_x, (N, Cin, H, W), jnp.float32)
    dw_w = jax.random.normal(k_dw, (Cin, 1, K, K), jnp.float32) * 0.2     # depthwise
    pw_w = jax.random.normal(k_pw, (Cout, Cin, 1, 1), jnp.float32) * 0.2  # pointwise 1x1
    gamma = 1.0 + 0.1 * jax.random.normal(k_g, (Cout,), jnp.float32)
    beta = 0.1 * jax.random.normal(k_b, (Cout,), jnp.float32)
    run_mean = 0.1 * jax.random.normal(k_m, (Cout,), jnp.float32)
    run_var = 1.0 + 0.1 * jax.random.uniform(k_v, (Cout,), jnp.float32)

    ref = _reference(x, dw_w, pw_w, gamma, beta, run_mean, run_var)

    # rows_per_strip=8 -> grid (N=2, strips=2): exercises the merged-halo strip path.
    out = dws_conv2d(x, dw_w, pw_w, gamma, beta, run_mean, run_var, rows_per_strip=8)
    out = jax.block_until_ready(out)
    assert out.shape == (N, Cout, H, W)
    # bf16 MXU operands -> compare to the f32 reference with a bf16-level tolerance.
    assert jnp.allclose(out, ref, atol=2e-2, rtol=2e-2), "mismatch (strip path)"

    # Auto strip-size selection (single strip at this size) as a second sanity check.
    out2 = jax.block_until_ready(
        dws_conv2d(x, dw_w, pw_w, gamma, beta, run_mean, run_var))
    assert jnp.allclose(out2, ref, atol=2e-2, rtol=2e-2), "mismatch (auto path)"

    print("KERNEL_OK")
</pallas_src>

<mosaic_0001>
module attributes {stable_mosaic.version = 11 : i64} {
  func.func @_dws_kernel(%arg0: i32, %arg1: i32, %arg2: memref<1x8x18x4xbf16, #tpu.memory_space<vmem>>, %arg3: memref<1x2x18x4xbf16, #tpu.memory_space<vmem>>, %arg4: memref<36x128xbf16, #tpu.memory_space<vmem>>, %arg5: memref<2x128xf32, #tpu.memory_space<vmem>>, %arg6: memref<1x8x16x128xf32, #tpu.memory_space<vmem>>) attributes {dimension_semantics = [#tpu.dimension_semantics<parallel>, #tpu.dimension_semantics<parallel>], iteration_bounds = array<i64: 2, 2>, scalar_prefetch = 0 : i64, scratch_operands = 0 : i64, tpu.core_type = #tpu.core_type<tc>, window_params = [{transform_indices = @transform_0, window_bounds = array<i64: 1, 8, 18, 4>}, {transform_indices = @transform_1, window_bounds = array<i64: 1, 2, 18, 4>}, {pipeline_mode = #tpu.pipeline_mode<synchronous>, transform_indices = @transform_2, window_bounds = array<i64: 36, 128>}, {pipeline_mode = #tpu.pipeline_mode<synchronous>, transform_indices = @transform_3, window_bounds = array<i64: 2, 128>}, {transform_indices = @transform_4, window_bounds = array<i64: 1, 8, 16, 128>}]} {
    %c0 = arith.constant 0 : index
    %c0_0 = arith.constant 0 : index
    %c0_1 = arith.constant 0 : index
    %c0_2 = arith.constant 0 : index
    %0 = vector.load %arg2[%c0, %c0_0, %c0_1, %c0_2] : memref<1x8x18x4xbf16, #tpu.memory_space<vmem>>, vector<1x8x18x4xbf16>
    %1 = vector.shape_cast %0 : vector<1x8x18x4xbf16> to vector<8x18x4xbf16>
    %c0_3 = arith.constant 0 : index
    %c0_4 = arith.constant 0 : index
    %c0_5 = arith.constant 0 : index
    %c0_6 = arith.constant 0 : index
    %2 = vector.load %arg3[%c0_3, %c0_4, %c0_5, %c0_6] : memref<1x2x18x4xbf16, #tpu.memory_space<vmem>>, vector<1x2x18x4xbf16>
    %3 = vector.shape_cast %2 : vector<1x2x18x4xbf16> to vector<2x18x4xbf16>
    %4 = tpu.concatenate %1, %3 in 0 : vector<8x18x4xbf16>, vector<2x18x4xbf16> -> vector<10x18x4xbf16>
    %5 = vector.extract_strided_slice %4 {offsets = [0, 0, 0], sizes = [8, 16, 4], strides = [1, 1, 1]} : vector<10x18x4xbf16> to vector<8x16x4xbf16>
    %6 = vector.extract_strided_slice %4 {offsets = [0, 1, 0], sizes = [8, 16, 4], strides = [1, 1, 1]} : vector<10x18x4xbf16> to vector<8x16x4xbf16>
    %7 = vector.extract_strided_slice %4 {offsets = [0, 2, 0], sizes = [8, 16, 4], strides = [1, 1, 1]} : vector<10x18x4xbf16> to vector<8x16x4xbf16>
    %8 = vector.extract_strided_slice %4 {offsets = [1, 0, 0], sizes = [8, 16, 4], strides = [1, 1, 1]} : vector<10x18x4xbf16> to vector<8x16x4xbf16>
    %9 = vector.extract_strided_slice %4 {offsets = [1, 1, 0], sizes = [8, 16, 4], strides = [1, 1, 1]} : vector<10x18x4xbf16> to vector<8x16x4xbf16>
    %10 = vector.extract_strided_slice %4 {offsets = [1, 2, 0], sizes = [8, 16, 4], strides = [1, 1, 1]} : vector<10x18x4xbf16> to vector<8x16x4xbf16>
    %11 = vector.extract_strided_slice %4 {offsets = [2, 0, 0], sizes = [8, 16, 4], strides = [1, 1, 1]} : vector<10x18x4xbf16> to vector<8x16x4xbf16>
    %12 = vector.extract_strided_slice %4 {offsets = [2, 1, 0], sizes = [8, 16, 4], strides = [1, 1, 1]} : vector<10x18x4xbf16> to vector<8x16x4xbf16>
    %13 = vector.extract_strided_slice %4 {offsets = [2, 2, 0], sizes = [8, 16, 4], strides = [1, 1, 1]} : vector<10x18x4xbf16> to vector<8x16x4xbf16>
    %14 = tpu.concatenate %5, %6, %7, %8, %9, %10, %11, %12, %13 in 2 : vector<8x16x4xbf16>, vector<8x16x4xbf16>, vector<8x16x4xbf16>, vector<8x16x4xbf16>, vector<8x16x4xbf16>, vector<8x16x4xbf16>, vector<8x16x4xbf16>, vector<8x16x4xbf16>, vector<8x16x4xbf16> -> vector<8x16x36xbf16>
    %15 = vector.shape_cast %14 : vector<8x16x36xbf16> to vector<128x36xbf16>
    %c0_7 = arith.constant 0 : index
    %c0_8 = arith.constant 0 : index
    %16 = vector.load %arg4[%c0_7, %c0_8] : memref<36x128xbf16, #tpu.memory_space<vmem>>, vector<36x128xbf16>
    %cst = arith.constant dense<0.000000e+00> : vector<128x128xf32>
    %17 = tpu.matmul %15, %16, %cst {dimension_numbers = #tpu.dot_dimension_numbers<[1], [0], [0], [1], [0, 0, 1, 1], [], []>} : vector<128x36xbf16>, vector<36x128xbf16>, vector<128x128xf32> -> vector<128x128xf32>
    %c0_9 = arith.constant 0 : index
    %c0_10 = arith.constant 0 : index
    %18 = vector.load %arg5[%c0_9, %c0_10] : memref<2x128xf32, #tpu.memory_space<vmem>>, vector<1x128xf32>
    %19 = vector.broadcast %18 : vector<1x128xf32> to vector<128x128xf32>
    %20 = arith.mulf %17, %19 : vector<128x128xf32>
    %c1 = arith.constant 1 : index
    %c0_11 = arith.constant 0 : index
    %21 = vector.load %arg5[%c1, %c0_11] : memref<2x128xf32, #tpu.memory_space<vmem>>, vector<1x128xf32>
    %22 = vector.broadcast %21 : vector<1x128xf32> to vector<128x128xf32>
    %23 = arith.addf %20, %22 : vector<128x128xf32>
    %24 = arith.negf %23 : vector<128x128xf32>
    %25 = math.exp %24 : vector<128x128xf32>
    %cst_12 = arith.constant 1.000000e+00 : f32
    %26 = vector.broadcast %cst_12 : f32 to vector<128x128xf32>
    %27 = arith.addf %26, %25 : vector<128x128xf32>
    %28 = arith.divf %26, %27 : vector<128x128xf32>
    %29 = arith.mulf %23, %28 : vector<128x128xf32>
    %30 = vector.shape_cast %29 : vector<128x128xf32> to vector<8x16x128xf32>
    %c0_13 = arith.constant 0 : index
    %c0_14 = arith.constant 0 : index
    %c0_15 = arith.constant 0 : index
    %c0_16 = arith.constant 0 : index
    %31 = vector.load %arg6[%c0_13, %c0_14, %c0_15, %c0_16] : memref<1x8x16x128xf32, #tpu.memory_space<vmem>>, vector<1x8x16x128xf32>
    %32 = vector.shape_cast %31 : vector<1x8x16x128xf32> to vector<8x16x128xf32>
    %33 = vector.shape_cast %30 : vector<8x16x128xf32> to vector<1x8x16x128xf32>
    tpu.vector_store %arg6[%c0_13, %c0_14, %c0_15, %c0_16], %33 {strides = array<i32>} : memref<1x8x16x128xf32, #tpu.memory_space<vmem>>, vector<1x8x16x128xf32>,
    return
  }
  func.func @transform_0(%arg0: i32, %arg1: i32) -> (i32, i32, i32, i32) {
    %c0_i32 = arith.constant 0 : i32
    %c0_i32_0 = arith.constant 0 : i32
    %c0_i32_1 = arith.constant 0 : i32
    return %arg0, %arg1, %c0_i32, %c0_i32_0 : i32, i32, i32, i32
  }
  func.func @transform_1(%arg0: i32, %arg1: i32) -> (i32, i32, i32, i32) {
    %c1_i32 = arith.constant 1 : i32
    %0 = arith.addi %arg1, %c1_i32 : i32
    %c4_i32 = arith.constant 4 : i32
    %1 = arith.muli %0, %c4_i32 : i32
    %c0_i32 = arith.constant 0 : i32
    %c0_i32_0 = arith.constant 0 : i32
    %c0_i32_1 = arith.constant 0 : i32
    return %arg0, %1, %c0_i32, %c0_i32_0 : i32, i32, i32, i32
  }
  func.func @transform_2(%arg0: i32, %arg1: i32) -> (i32, i32) {
    %c0_i32 = arith.constant 0 : i32
    %c0_i32_0 = arith.constant 0 : i32
    %c0_i32_1 = arith.constant 0 : i32
    return %c0_i32, %c0_i32_0 : i32, i32
  }
  func.func @transform_3(%arg0: i32, %arg1: i32) -> (i32, i32) {
    %c0_i32 = arith.constant 0 : i32
    %c0_i32_0 = arith.constant 0 : i32
    %c0_i32_1 = arith.constant 0 : i32
    return %c0_i32, %c0_i32_0 : i32, i32
  }
  func.func @transform_4(%arg0: i32, %arg1: i32) -> (i32, i32, i32, i32) {
    %c0_i32 = arith.constant 0 : i32
    %c0_i32_0 = arith.constant 0 : i32
    %c0_i32_1 = arith.constant 0 : i32
    return %arg0, %arg1, %c0_i32, %c0_i32_0 : i32, i32, i32, i32
  }
}

</mosaic_0001>

<llo_original>
// kernel: tpu_custom_call.1
$region0: #{tpu_custom_call.1}
  #allocation0 [shape = 'u32[]', space=smem, size = 0x4, offset = 0x4, fixed_abs, tag = 'smem constant byte address 0x4 - core index']
  #allocation1 [shape = 'u32[72,128]{1,0:T(1,128)}', space=vmem, size = 0x9000, scoped, tag = 'internal scratch']
  %s0 = inlined_call_operand.vmem [shape: bf16[2,18,18,4], index: 0, kind: input, shape index: {}]
  %s1 = inlined_call_operand.vmem [shape: bf16[2,18,18,4], index: 1, kind: input, shape index: {}]
  %s2 = inlined_call_operand.vmem [shape: bf16[36,128], index: 2, kind: input, shape index: {}]
  %s3 = inlined_call_operand.vmem [shape: f32[2,128], index: 3, kind: input, shape index: {}]
  %s4 = inlined_call_operand.hbm [shape: f32[2,16,16,128], index: 4, kind: output, shape index: {}]
  %s5 = sld [smem:[#allocation0]]
  $region49: #{tpu_custom_call.1} parent=0
    _
  %s7 = ssub.s32 1, %s5
  %s8 = scalar_select 0, %s7, %s5
  $region1: #{tpu_custom_call.1} parent=0
    #allocation2 [shape = 'u8[131072]{0}', space=vmem, size = 0x20000, scoped, tag = 'output window, operand 0']
    #allocation3 [shape = 's32[2]{0}', space=sflag, size = 0x8, scoped, tag = 'scoped memory for tpu_custom_call.1']
    %9 = vsyncpa [#allocation3], 0
    %s10 = scalar_lea.sflag [#allocation3], 1
    %11 = vsyncpa %s10, 0
    loop: start=0, step=1, limit=6
    $region2: #{tpu_custom_call.1} parent=1 // loop_pre_header
      _
    $region3: #{tpu_custom_call.1} parent=1 // loop_header
      %s13 = sphi 0, %s17
      %p14 = scmp.ge.s32.totalorder %s13, 6
      %s20 = sphi 0, %s32
      %s21 = sphi 0, %s28
      %s22 = sphi 0, %s20
      %s23 = sphi 0, %s21
      %s24 = sphi 0, %s22
      %s25 = sphi 0, %s23
      %s37 = sphi 0, %s39
      %s40 = sphi 0, %s37
      %s41 = sphi 0, %s40
      %s57 = sphi 0, %s41
      %s69 = sphi 0, %s71
      %s72 = sphi 0, %s69
      %s73 = sphi 0, %s72
      %s89 = sphi 0, %s73
      %s93 = sphi 0, %s93
      %s95 = sphi 0, %s93
      %s96 = sphi 0, %s95
      %s110 = sphi 0, %s96
      %s114 = sphi 0, %s114
      %s116 = sphi 0, %s114
      %s117 = sphi 0, %s116
      %s131 = sphi 0, %s117
      %s139 = sphi 0, %s141
      %s142 = sphi 0, %s139
      %s143 = sphi 0, %s142
      %s159 = sphi 0, %s143
    $region4: #{tpu_custom_call.1} parent=1 // loop_header_branch
      %16 = sbr.rel (%p14) target = $region8
    $region5: #{tpu_custom_call.1} parent=1 // loop_body
      %s18 = ssub.s32 %s13, 1
      %s19 = ssub.s32 %s13, 2
      %s26 = sadd.s32 1, %s21
      %p27 = scmp.ge.s32.totalorder %s26, 2
      %s28 = scalar_select %p27, 0, %s26
      %s29 = sadd.s32 1, %s20
      %s30 = scalar_select %p27, %s29, %s20
      %p31 = scmp.ge.s32.totalorder %s30, 2
      %s32 = scalar_select %p31, 0, %s30
      %s33 = ssub.s32 %s20, %s32
      %s34 = ssub.s32 %s21, %s28
      %s35 = sor.u32 %s33, %s34
      %p36 = scmp.eq.s32.totalorder %s35, 0
      %s38 = sadd.s32 %s37, 1
      %s39 = scalar_select %p36, %s37, %s38
      %p42 = pneg %p36
      %p43 = scmp.eq.s32.totalorder %s13, 3
      %p44 = por %p42, %p43
      %p45 = scmp.ne.s32.totalorder %s37, %s40
      %p46 = scmp.eq.s32.totalorder %s13, 0
      %p47 = por %p45, %p46
      %p48 = scmp.ne.s32.totalorder %s37, %s40
      %p49 = scmp.eq.s32.totalorder %s18, 3
      %p50 = por %p48, %p49
      %p51 = scmp.ne.s32.totalorder %s40, %s41
      %p52 = scmp.eq.s32.totalorder %s18, 0
      %p53 = por %p51, %p52
      %p54 = scmp.ne.s32.totalorder %s40, %s41
      %p55 = scmp.eq.s32.totalorder %s19, 3
      %p56 = por %p54, %p55
      %p58 = scmp.ne.s32.totalorder %s41, %s57
      %p59 = scmp.eq.s32.totalorder %s19, 0
      %p60 = por %p58, %p59
      %s61 = sadd.s32 %s21, 1
      %s62 = smul.u32 %s61, 4
      %s63 = sadd.s32 %s28, 1
      %s64 = smul.u32 %s63, 4
      %s65 = ssub.s32 %s20, %s32
      %s66 = ssub.s32 %s62, %s64
      %s67 = sor.u32 %s65, %s66
      %p68 = scmp.eq.s32.totalorder %s67, 0
      %s70 = sadd.s32 %s69, 1
      %s71 = scalar_select %p68, %s69, %s70
      %p74 = pneg %p68
      %p75 = scmp.eq.s32.totalorder %s13, 3
      %p76 = por %p74, %p75
      %p77 = scmp.ne.s32.totalorder %s69, %s72
      %p78 = scmp.eq.s32.totalorder %s13, 0
      %p79 = por %p77, %p78
      %p80 = scmp.ne.s32.totalorder %s69, %s72
      %p81 = scmp.eq.s32.totalorder %s18, 3
      %p82 = por %p80, %p81
      %p83 = scmp.ne.s32.totalorder %s72, %s73
      %p84 = scmp.eq.s32.totalorder %s18, 0
      %p85 = por %p83, %p84
      %p86 = scmp.ne.s32.totalorder %s72, %s73
      %p87 = scmp.eq.s32.totalorder %s19, 3
      %p88 = por %p86, %p87
      %p90 = scmp.ne.s32.totalorder %s73, %s89
      %p91 = scmp.eq.s32.totalorder %s19, 0
      %p92 = por %p90, %p91
      %s94 = sadd.s32 %s93, 1
      %p97 = scmp.eq.s32.totalorder %s13, 3
      %p98 = scmp.ne.s32.totalorder %s93, %s95
      %p99 = scmp.eq.s32.totalorder %s13, 0
      %p100 = por %p98, %p99
      %p101 = scmp.ne.s32.totalorder %s93, %s95
      %p102 = scmp.eq.s32.totalorder %s18, 3
      %p103 = por %p101, %p102
      %p104 = scmp.ne.s32.totalorder %s95, %s96
      %p105 = scmp.eq.s32.totalorder %s18, 0
      %p106 = por %p104, %p105
      %p107 = scmp.ne.s32.totalorder %s95, %s96
      %p108 = scmp.eq.s32.totalorder %s19, 3
      %p109 = por %p107, %p108
      %p111 = scmp.ne.s32.totalorder %s96, %s110
      %p112 = scmp.eq.s32.totalorder %s19, 0
      %p113 = por %p111, %p112
      %s115 = sadd.s32 %s114, 1
      %p118 = scmp.eq.s32.totalorder %s13, 3
      %p119 = scmp.ne.s32.totalorder %s114, %s116
      %p120 = scmp.eq.s32.totalorder %s13, 0
      %p121 = por %p119, %p120
      %p122 = scmp.ne.s32.totalorder %s114, %s116
      %p123 = scmp.eq.s32.totalorder %s18, 3
      %p124 = por %p122, %p123
      %p125 = scmp.ne.s32.totalorder %s116, %s117
      %p126 = scmp.eq.s32.totalorder %s18, 0
      %p127 = por %p125, %p126
      %p128 = scmp.ne.s32.totalorder %s116, %s117
      %p129 = scmp.eq.s32.totalorder %s19, 3
      %p130 = por %p128, %p129
      %p132 = scmp.ne.s32.totalorder %s117, %s131
      %p133 = scmp.eq.s32.totalorder %s19, 0
      %p134 = por %p132, %p133
      %s135 = ssub.s32 %s20, %s32
      %s136 = ssub.s32 %s21, %s28
      %s137 = sor.u32 %s135, %s136
      %p138 = scmp.eq.s32.totalorder %s137, 0
      %s140 = sadd.s32 %s139, 1
      %s141 = scalar_select %p138, %s139, %s140
      %p144 = pneg %p138
      %p145 = scmp.eq.s32.totalorder %s13, 3
      %p146 = por %p144, %p145
      %p147 = scmp.ne.s32.totalorder %s139, %s142
      %p148 = scmp.eq.s32.totalorder %s13, 0
      %p149 = por %p147, %p148
      %p150 = scmp.ne.s32.totalorder %s139, %s142
      %p151 = scmp.eq.s32.totalorder %s18, 3
      %p152 = por %p150, %p151
      %p153 = scmp.ne.s32.totalorder %s142, %s143
      %p154 = scmp.eq.s32.totalorder %s18, 0
      %p155 = por %p153, %p154
      %p156 = scmp.ne.s32.totalorder %s142, %s143
      %p157 = scmp.eq.s32.totalorder %s19, 3
      %p158 = por %p156, %p157
      %p160 = scmp.ne.s32.totalorder %s143, %s159
      %p161 = scmp.eq.s32.totalorder %s19, 0
      %p162 = por %p160, %p161
      %p163 = scmp.le.s32.totalorder 1, %s13
      %p164 = scmp.lt.s32.totalorder %s13, 5
      %p165 = pnand %p163, %p164
      %p166 = pneg %p165
      // Predicated region
      $region9: #{tpu_custom_call.1} parent=5 // pred_check
        _
      $region10: #{tpu_custom_call.1} parent=5 // pred_check_branch
        %168 = sbr.rel (%p165) target = $region12
      $region11: #{tpu_custom_call.1} parent=5 // pred_region
        %s169 = ssub.s32 %s13, 1
        // Predicated region
        $region13: #{tpu_custom_call.1} parent=11 // pred_check
          %p170 = pneg %p106
        $region14: #{tpu_custom_call.1} parent=11 // pred_check_branch
          %172 = sbr.rel (%p170) target = $region16
        $region15: #{tpu_custom_call.1} parent=11 // pred_region
          _
        $region16: #{tpu_custom_call.1} parent=11 // pred_fallthru
          _
        // Predicated region
        $region17: #{tpu_custom_call.1} parent=11 // pred_check
          %p173 = pneg %p127
        $region18: #{tpu_custom_call.1} parent=11 // pred_check_branch
          %175 = sbr.rel (%p173) target = $region20
        $region19: #{tpu_custom_call.1} parent=11 // pred_region
          _
        $region20: #{tpu_custom_call.1} parent=11 // pred_fallthru
          _
      $region12: #{tpu_custom_call.1} parent=5 // pred_fallthru
        _
      %p176 = scmp.lt.s32.totalorder %s13, 4
      // Predicated region
      $region21: #{tpu_custom_call.1} parent=5 // pred_check
        %p177 = pneg %p176
      $region22: #{tpu_custom_call.1} parent=5 // pred_check_branch
        %179 = sbr.rel (%p177) target = $region24
      $region23: #{tpu_custom_call.1} parent=5 // pred_region
        // Predicated region
        $region25: #{tpu_custom_call.1} parent=23 // pred_check
          %p180 = pneg %p47
        $region26: #{tpu_custom_call.1} parent=23 // pred_check_branch
          %182 = sbr.rel (%p180) target = $region28
        $region27: #{tpu_custom_call.1} parent=23 // pred_region
          %s183 = smul.u32 8, %s21
          %s184 = ssub.s32 18, %s183
          %p185 = scmp.lt.s32.totalorder %s184, 8
          %s186 = scalar_select %p185, %s184, 8
          %s187 = smul.u32 4, %s186
          %s188 = smul.u32 %s187, 3
          %p189 = scmp.lt.s32.totalorder %s20, 1
          %s190 = scalar_select %p189, %s20, 1
          %p191 = scmp.lt.s32.totalorder %s183, 17
          %s192 = scalar_select %p191, %s183, 17
          %s193 = smul.addr %s192, 3
          %s194 = smul.addr %s190, 54
          %s195 = sadd.s32 %s193, %s194
          %s196 = smul.addr %s195, 4
          %s197 = scalar_lea.vmem %s0, %s196
          %s198 = smul.u32 8, %s21
          %s199 = ssub.s32 18, %s198
          %p200 = scmp.lt.s32.totalorder %s199, 8
          %s201 = scalar_select %p200, %s199, 8
          %s202 = smul.u32 4, %s201
          %s203 = smul.u32 %s202, 3
        $region28: #{tpu_custom_call.1} parent=23 // pred_fallthru
          _
        // Predicated region
        $region29: #{tpu_custom_call.1} parent=23 // pred_check
          %p204 = pneg %p79
        $region30: #{tpu_custom_call.1} parent=23 // pred_check_branch
          %206 = sbr.rel (%p204) target = $region32
        $region31: #{tpu_custom_call.1} parent=23 // pred_region
          %s207 = sadd.s32 %s21, 1
          %s208 = smul.u32 %s207, 4
          %s209 = smul.u32 2, %s208
          %p210 = scmp.lt.s32.totalorder %s20, 1
          %s211 = scalar_select %p210, %s20, 1
          %p212 = scmp.lt.s32.totalorder %s209, 17
          %s213 = scalar_select %p212, %s209, 17
          %s214 = smul.addr %s213, 3
          %s215 = smul.addr %s211, 54
          %s216 = sadd.s32 %s214, %s215
          %s217 = smul.addr %s216, 4
          %s218 = scalar_lea.vmem %s1, %s217
          %s219 = sadd.s32 %s21, 1
          %s220 = smul.u32 %s219, 4
          %s221 = smul.u32 2, %s220
        $region32: #{tpu_custom_call.1} parent=23 // pred_fallthru
          _
      $region24: #{tpu_custom_call.1} parent=5 // pred_fallthru
        _
      %p222 = scmp.le.s32.totalorder 1, %s13
      %p223 = scmp.lt.s32.totalorder %s13, 5
      %p224 = pnand %p222, %p223
      %p225 = pneg %p224
      // Predicated region
      $region33: #{tpu_custom_call.1} parent=5 // pred_check
        _
      $region34: #{tpu_custom_call.1} parent=5 // pred_check_branch
        %227 = sbr.rel (%p224) target = $region36
      $region35: #{tpu_custom_call.1} parent=5 // pred_region
        %s228 = ssub.s32 %s13, 1
        %s229 = smul.u32 8, %s23
        %s230 = ssub.s32 18, %s229
        %p231 = scmp.lt.s32.totalorder %s230, 8
        %s232 = scalar_select %p231, %s230, 8
        %s233 = smul.u32 4, %s232
        %s234 = smul.u32 %s233, 3
        %p235 = scmp.lt.s32.totalorder %s22, 1
        %s236 = scalar_select %p235, %s22, 1
        %p237 = scmp.lt.s32.totalorder %s229, 17
        %s238 = scalar_select %p237, %s229, 17
        %s239 = smul.addr %s238, 3
        %s240 = smul.addr %s236, 54
        %s241 = sadd.s32 %s239, %s240
        %s242 = smul.addr %s241, 4
        %s243 = scalar_lea.vmem %s0, %s242
        %p244 = pneg %p53
        %p245 = pneg %p50
        %s246 = sadd.s32 %s23, 1
        %s247 = smul.u32 %s246, 4
        %s248 = smul.u32 2, %s247
        %p249 = scmp.lt.s32.totalorder %s22, 1
        %s250 = scalar_select %p249, %s22, 1
        %p251 = scmp.lt.s32.totalorder %s248, 17
        %s252 = scalar_select %p251, %s248, 17
        %s253 = smul.addr %s252, 3
        %s254 = smul.addr %s250, 54
        %s255 = sadd.s32 %s253, %s254
        %s256 = smul.addr %s255, 4
        %s257 = scalar_lea.vmem %s1, %s256
        %p258 = pneg %p85
        %p259 = pneg %p82
        %p260 = pneg %p106
        %p261 = pneg %p103
        %p262 = pneg %p127
        %p263 = pneg %p124
        %p264 = pneg %p155
        %p265 = pneg %p152
        %s266 = sand.u32 %s142, 1
        %s267 = scalar_lea.sflag [#allocation3], %s266
        %s268 = sand.u32 %s142, 1
        %s269 = smul.addr %s268, 128
        %s270 = scalar_lea.vmem [#allocation2], %s269
        %s271 = smul.u32 8, %s23
        %s272 = ssub.s32 18, %s271
        %p273 = scmp.lt.s32.totalorder %s272, 8
        %s274 = scalar_select %p273, %s272, 8
        %s275 = smul.u32 4, %s274
        %s276 = smul.u32 %s275, 3
        %p277 = scmp.lt.s32.totalorder %s22, 1
        %s278 = scalar_select %p277, %s22, 1
        %p279 = scmp.lt.s32.totalorder %s271, 17
        %s280 = scalar_select %p279, %s271, 17
        %s281 = smul.addr %s280, 3
        %s282 = smul.addr %s278, 54
        %s283 = sadd.s32 %s281, %s282
        %s284 = smul.addr %s283, 4
        %s285 = scalar_lea.vmem %s0, %s284
        %s286 = smul.u32 8, %s23
        %s287 = ssub.s32 18, %s286
        %p288 = scmp.lt.s32.totalorder %s287, 8
        %s289 = scalar_select %p288, %s287, 8
        %s290 = smul.u32 4, %s289
        %s291 = smul.u32 %s290, 3
        %s292 = sadd.s32 %s23, 1
        %s293 = smul.u32 %s292, 4
        %s294 = smul.u32 2, %s293
        %p295 = scmp.lt.s32.totalorder %s22, 1
        %s296 = scalar_select %p295, %s22, 1
        %p297 = scmp.lt.s32.totalorder %s294, 17
        %s298 = scalar_select %p297, %s294, 17
        %s299 = smul.addr %s298, 3
        %s300 = smul.addr %s296, 54
        %s301 = sadd.s32 %s299, %s300
        %s302 = smul.addr %s301, 4
        %s303 = scalar_lea.vmem %s1, %s302
        %s304 = sadd.s32 %s23, 1
        %s305 = smul.u32 %s304, 4
        %s306 = smul.u32 2, %s305
        %s307 = smul.u32 8, %s23
        %v309 = vld [vmem:[%s285] sm:$0xf]
        %v310 = vld [vmem:[%s285 + $0x4] sm:$0xf]
        %v311 = vld [vmem:[%s285 + $0x8] sm:$0x1]
        %v312 = vld [vmem:[%s285 + $0xc] sm:$0xf]
        %v313 = vld [vmem:[%s285 + $0x10] sm:$0xf]
        %v314 = vld [vmem:[%s285 + $0x14] sm:$0x1]
        %v315 = vld [vmem:[%s285 + $0x18] sm:$0xf]
        %v316 = vld [vmem:[%s285 + $0x1c] sm:$0xf]
        %v317 = vld [vmem:[%s285 + $0x20] sm:$0x1]
        %v318 = vld [vmem:[%s285 + $0x24] sm:$0xf]
        %v319 = vld [vmem:[%s285 + $0x28] sm:$0xf]
        %v320 = vld [vmem:[%s285 + $0x2c] sm:$0x1]
        %v321 = vld [vmem:[%s285 + $0x30] sm:$0xf]
        %v322 = vld [vmem:[%s285 + $0x34] sm:$0xf]
        %v323 = vld [vmem:[%s285 + $0x38] sm:$0x1]
        %v324 = vld [vmem:[%s285 + $0x3c] sm:$0xf]
        %v325 = vld [vmem:[%s285 + $0x40] sm:$0xf]
        %v326 = vld [vmem:[%s285 + $0x44] sm:$0x1]
        %v327 = vld [vmem:[%s285 + $0x48] sm:$0xf]
        %v328 = vld [vmem:[%s285 + $0x4c] sm:$0xf]
        %v329 = vld [vmem:[%s285 + $0x50] sm:$0x1]
        %v330 = vld [vmem:[%s285 + $0x54] sm:$0xf]
        %v331 = vld [vmem:[%s285 + $0x58] sm:$0xf]
        %v332 = vld [vmem:[%s285 + $0x5c] sm:$0x1]
        %v333 = vld [vmem:[%s303] sm:$0xf]
        %v334 = vld [vmem:[%s303 + $0x4] sm:$0xf]
        %v335 = vld [vmem:[%s303 + $0x8] sm:$0x1]
        %v336 = vld [vmem:[%s303 + $0xc] sm:$0xf]
        %v337 = vld [vmem:[%s303 + $0x10] sm:$0xf]
        %v338 = vld [vmem:[%s303 + $0x14] sm:$0x1]
        %v355 = vunpack.c.l.b16 %v309
        %v356 = vunpack.c.l.b16 %v310
        %v357 = vunpack.c.l.b16 %v312
        %v358 = vunpack.c.l.b16 %v313
        %v359 = vunpack.c.l.b16 %v315
        %v360 = vunpack.c.l.b16 %v316
        %v361 = vunpack.c.l.b16 %v318
        %v362 = vunpack.c.l.b16 %v319
        %v363 = vunpack.c.l.b16 %v321
        %v364 = vunpack.c.l.b16 %v322
        %v365 = vunpack.c.l.b16 %v324
        %v366 = vunpack.c.l.b16 %v325
        %v367 = vunpack.c.l.b16 %v327
        %v368 = vunpack.c.l.b16 %v328
        %v369 = vunpack.c.l.b16 %v330
        %v370 = vunpack.c.l.b16 %v331
        %v371 = vpack.c.b16 %v356, %v355
        %v372 = vpack.c.b16 %v358, %v357
        %v373 = vpack.c.b16 %v360, %v359
        %v374 = vpack.c.b16 %v362, %v361
        %v375 = vpack.c.b16 %v364, %v363
        %v376 = vpack.c.b16 %v366, %v365
        %v377 = vpack.c.b16 %v368, %v367
        %v378 = vpack.c.b16 %v370, %v369
        %v387 = vunpack.c.l.b16 %v311
        %v388 = vunpack.c.l.b16 %v314
        %v389 = vunpack.c.l.b16 %v317
        %v390 = vunpack.c.l.b16 %v320
        %v391 = vunpack.c.l.b16 %v323
        %v392 = vunpack.c.l.b16 %v326
        %v393 = vunpack.c.l.b16 %v329
        %v394 = vunpack.c.l.b16 %v332
        %v395 = vpack.c.b16 %v387, %v387
        %v396 = vpack.c.b16 %v388, %v388
        %v397 = vpack.c.b16 %v389, %v389
        %v398 = vpack.c.b16 %v390, %v390
        %v399 = vpack.c.b16 %v391, %v391
        %v400 = vpack.c.b16 %v392, %v392
        %v401 = vpack.c.b16 %v393, %v393
        %v402 = vpack.c.b16 %v394, %v394
        %vm403 = vsmask.f32 7424
        %v405 = vshrl.u32 %v371, 16
        %v407 = vshll.u32 %v371, 16
        %v409 = vrot.slane %v407, 1
        %v410 = vor.u32 %v405, %v409
        %v412 = vshll.u32 %v395, 16
        %v414 = vrot.slane %v412, 1
        %v415 = vsel %vm403, %v410, %v414
        %v417 = vshrl.u32 %v372, 16
        %v419 = vshll.u32 %v372, 16
        %v421 = vrot.slane %v419, 1
        %v422 = vor.u32 %v417, %v421
        %v424 = vshll.u32 %v396, 16
        %v426 = vrot.slane %v424, 1
        %v427 = vsel %vm403, %v422, %v426
        %v429 = vshrl.u32 %v373, 16
        %v431 = vshll.u32 %v373, 16
        %v433 = vrot.slane %v431, 1
        %v434 = vor.u32 %v429, %v433
        %v436 = vshll.u32 %v397, 16
        %v438 = vrot.slane %v436, 1
        %v439 = vsel %vm403, %v434, %v438
        %v441 = vshrl.u32 %v374, 16
        %v443 = vshll.u32 %v374, 16
        %v445 = vrot.slane %v443, 1
        %v446 = vor.u32 %v441, %v445
        %v448 = vshll.u32 %v398, 16
        %v450 = vrot.slane %v448, 1
        %v451 = vsel %vm403, %v446, %v450
        %v453 = vshrl.u32 %v375, 16
        %v455 = vshll.u32 %v375, 16
        %v457 = vrot.slane %v455, 1
        %v458 = vor.u32 %v453, %v457
        %v460 = vshll.u32 %v399, 16
        %v462 = vrot.slane %v460, 1
        %v463 = vsel %vm403, %v458, %v462
        %v465 = vshrl.u32 %v376, 16
        %v467 = vshll.u32 %v376, 16
        %v469 = vrot.slane %v467, 1
        %v470 = vor.u32 %v465, %v469
        %v472 = vshll.u32 %v400, 16
        %v474 = vrot.slane %v472, 1
        %v475 = vsel %vm403, %v470, %v474
        %v477 = vshrl.u32 %v377, 16
        %v479 = vshll.u32 %v377, 16
        %v481 = vrot.slane %v479, 1
        %v482 = vor.u32 %v477, %v481
        %v484 = vshll.u32 %v401, 16
        %v486 = vrot.slane %v484, 1
        %v487 = vsel %vm403, %v482, %v486
        %v489 = vshrl.u32 %v378, 16
        %v491 = vshll.u32 %v378, 16
        %v493 = vrot.slane %v491, 1
        %v494 = vor.u32 %v489, %v493
        %v496 = vshll.u32 %v402, 16
        %v498 = vrot.slane %v496, 1
        %v499 = vsel %vm403, %v494, %v498
        %500 = vrot.lane.b32.xlu0 %v415, 4
        %v501 = vpop.permute.xlu0 %500
        %502 = vrot.lane.b32.xlu0 %v427, 4
        %v503 = vpop.permute.xlu0 %502
        %504 = vrot.lane.b32.xlu0 %v439, 4
        %v505 = vpop.permute.xlu0 %504
        %506 = vrot.lane.b32.xlu0 %v451, 4
        %v507 = vpop.permute.xlu0 %506
        %508 = vrot.lane.b32.xlu0 %v463, 4
        %v509 = vpop.permute.xlu0 %508
        %510 = vrot.lane.b32.xlu0 %v475, 4
        %v511 = vpop.permute.xlu0 %510
        %512 = vrot.lane.b32.xlu0 %v487, 4
        %v513 = vpop.permute.xlu0 %512
        %514 = vrot.lane.b32.xlu0 %v499, 4
        %v515 = vpop.permute.xlu0 %514
        %vm516 = vcmask 1046528
        %v517 = vrot.slane %v371, 1
        %v518 = vrot.slane %v395, 1
        %v519 = vsel %vm516, %v517, %v518
        %v520 = vrot.slane %v372, 1
        %v521 = vrot.slane %v396, 1
        %v522 = vsel %vm516, %v520, %v521
        %v523 = vrot.slane %v373, 1
        %v524 = vrot.slane %v397, 1
        %v525 = vsel %vm516, %v523, %v524
        %v526 = vrot.slane %v374, 1
        %v527 = vrot.slane %v398, 1
        %v528 = vsel %vm516, %v526, %v527
        %v529 = vrot.slane %v375, 1
        %v530 = vrot.slane %v399, 1
        %v531 = vsel %vm516, %v529, %v530
        %v532 = vrot.slane %v376, 1
        %v533 = vrot.slane %v400, 1
        %v534 = vsel %vm516, %v532, %v533
        %v535 = vrot.slane %v377, 1
        %v536 = vrot.slane %v401, 1
        %v537 = vsel %vm516, %v535, %v536
        %v538 = vrot.slane %v378, 1
        %v539 = vrot.slane %v402, 1
        %v540 = vsel %vm516, %v538, %v539
        %541 = vrot.lane.b32.xlu0 %v519, 8
        %v542 = vpop.permute.xlu0 %541
        %543 = vrot.lane.b32.xlu0 %v522, 8
        %v544 = vpop.permute.xlu0 %543
        %545 = vrot.lane.b32.xlu0 %v525, 8
        %v546 = vpop.permute.xlu0 %545
        %547 = vrot.lane.b32.xlu0 %v528, 8
        %v548 = vpop.permute.xlu0 %547
        %549 = vrot.lane.b32.xlu0 %v531, 8
        %v550 = vpop.permute.xlu0 %549
        %551 = vrot.lane.b32.xlu0 %v534, 8
        %v552 = vpop.permute.xlu0 %551
        %553 = vrot.lane.b32.xlu0 %v537, 8
        %v554 = vpop.permute.xlu0 %553
        %555 = vrot.lane.b32.xlu0 %v540, 8
        %v556 = vpop.permute.xlu0 %555
        %v559 = vunpack.c.l.b16 %v333
        %v560 = vunpack.c.l.b16 %v334
        %v561 = vpack.c.b16 %v560, %v559
        %562 = vrot.lane.b32.xlu0 %v372, 12
        %v563 = vpop.permute.xlu0 %562
        %564 = vrot.lane.b32.xlu0 %v373, 12
        %v565 = vpop.permute.xlu0 %564
        %566 = vrot.lane.b32.xlu0 %v374, 12
        %v567 = vpop.permute.xlu0 %566
        %568 = vrot.lane.b32.xlu0 %v375, 12
        %v569 = vpop.permute.xlu0 %568
        %570 = vrot.lane.b32.xlu0 %v376, 12
        %v571 = vpop.permute.xlu0 %570
        %572 = vrot.lane.b32.xlu0 %v377, 12
        %v573 = vpop.permute.xlu0 %572
        %574 = vrot.lane.b32.xlu0 %v378, 12
        %v575 = vpop.permute.xlu0 %574
        %576 = vrot.lane.b32.xlu0 %v561, 12
        %v577 = vpop.permute.xlu0 %576
        %v579 = vunpack.c.l.b16 %v335
        %v580 = vpack.c.b16 %v579, %v579
        %v582 = vshrl.u32 %v561, 16
        %v584 = vshll.u32 %v561, 16
        %v586 = vrot.slane %v584, 1
        %v587 = vor.u32 %v582, %v586
        %v589 = vshll.u32 %v580, 16
        %v591 = vrot.slane %v589, 1
        %v592 = vsel %vm403, %v587, %v591
        %593 = vrot.lane.b32.xlu0 %v427, 16
        %v594 = vpop.permute.xlu0 %593
        %595 = vrot.lane.b32.xlu0 %v439, 16
        %v596 = vpop.permute.xlu0 %595
        %597 = vrot.lane.b32.xlu0 %v451, 16
        %v598 = vpop.permute.xlu0 %597
        %599 = vrot.lane.b32.xlu0 %v463, 16
        %v600 = vpop.permute.xlu0 %599
        %601 = vrot.lane.b32.xlu0 %v475, 16
        %v602 = vpop.permute.xlu0 %601
        %603 = vrot.lane.b32.xlu0 %v487, 16
        %v604 = vpop.permute.xlu0 %603
        %605 = vrot.lane.b32.xlu0 %v499, 16
        %v606 = vpop.permute.xlu0 %605
        %607 = vrot.lane.b32.xlu0 %v592, 16
        %v608 = vpop.permute.xlu0 %607
        %v609 = vrot.slane %v561, 1
        %v610 = vrot.slane %v580, 1
        %v611 = vsel %vm516, %v609, %v610
        %612 = vrot.lane.b32.xlu0 %v522, 20
        %v613 = vpop.permute.xlu0 %612
        %614 = vrot.lane.b32.xlu0 %v525, 20
        %v615 = vpop.permute.xlu0 %614
        %616 = vrot.lane.b32.xlu0 %v528, 20
        %v617 = vpop.permute.xlu0 %616
        %618 = vrot.lane.b32.xlu0 %v531, 20
        %v619 = vpop.permute.xlu0 %618
        %620 = vrot.lane.b32.xlu0 %v534, 20
        %v621 = vpop.permute.xlu0 %620
        %622 = vrot.lane.b32.xlu0 %v537, 20
        %v623 = vpop.permute.xlu0 %622
        %624 = vrot.lane.b32.xlu0 %v540, 20
        %v625 = vpop.permute.xlu0 %624
        %626 = vrot.lane.b32.xlu0 %v611, 20
        %v627 = vpop.permute.xlu0 %626
        %v630 = vunpack.c.l.b16 %v336
        %v631 = vunpack.c.l.b16 %v337
        %v632 = vpack.c.b16 %v631, %v630
        %633 = vrot.lane.b32.xlu0 %v373, 24
        %v634 = vpop.permute.xlu0 %633
        %635 = vrot.lane.b32.xlu0 %v374, 24
        %v636 = vpop.permute.xlu0 %635
        %637 = vrot.lane.b32.xlu0 %v375, 24
        %v638 = vpop.permute.xlu0 %637
        %639 = vrot.lane.b32.xlu0 %v376, 24
        %v640 = vpop.permute.xlu0 %639
        %641 = vrot.lane.b32.xlu0 %v377, 24
        %v642 = vpop.permute.xlu0 %641
        %643 = vrot.lane.b32.xlu0 %v378, 24
        %v644 = vpop.permute.xlu0 %643
        %645 = vrot.lane.b32.xlu0 %v561, 24
        %v646 = vpop.permute.xlu0 %645
        %647 = vrot.lane.b32.xlu0 %v632, 24
        %v648 = vpop.permute.xlu0 %647
        %v650 = vunpack.c.l.b16 %v338
        %v651 = vpack.c.b16 %v650, %v650
        %v653 = vshrl.u32 %v632, 16
        %v655 = vshll.u32 %v632, 16
        %v657 = vrot.slane %v655, 1
        %v658 = vor.u32 %v653, %v657
        %v660 = vshll.u32 %v651, 16
        %v662 = vrot.slane %v660, 1
        %v663 = vsel %vm403, %v658, %v662
        %664 = vrot.lane.b32.xlu0 %v439, 28
        %v665 = vpop.permute.xlu0 %664
        %666 = vrot.lane.b32.xlu0 %v451, 28
        %v667 = vpop.permute.xlu0 %666
        %668 = vrot.lane.b32.xlu0 %v463, 28
        %v669 = vpop.permute.xlu0 %668
        %670 = vrot.lane.b32.xlu0 %v475, 28
        %v671 = vpop.permute.xlu0 %670
        %672 = vrot.lane.b32.xlu0 %v487, 28
        %v673 = vpop.permute.xlu0 %672
        %674 = vrot.lane.b32.xlu0 %v499, 28
        %v675 = vpop.permute.xlu0 %674
        %676 = vrot.lane.b32.xlu0 %v592, 28
        %v677 = vpop.permute.xlu0 %676
        %678 = vrot.lane.b32.xlu0 %v663, 28
        %v679 = vpop.permute.xlu0 %678
        %v680 = vrot.slane %v632, 1
        %v681 = vrot.slane %v651, 1
        %v682 = vsel %vm516, %v680, %v681
        %683 = vrot.lane.b32.xlu0 %v525, 32
        %v684 = vpop.permute.xlu0 %683
        %685 = vrot.lane.b32.xlu0 %v528, 32
        %v686 = vpop.permute.xlu0 %685
        %687 = vrot.lane.b32.xlu0 %v531, 32
        %v688 = vpop.permute.xlu0 %687
        %689 = vrot.lane.b32.xlu0 %v534, 32
        %v690 = vpop.permute.xlu0 %689
        %691 = vrot.lane.b32.xlu0 %v537, 32
        %v692 = vpop.permute.xlu0 %691
        %693 = vrot.lane.b32.xlu0 %v540, 32
        %v694 = vpop.permute.xlu0 %693
        %695 = vrot.lane.b32.xlu0 %v611, 32
        %v696 = vpop.permute.xlu0 %695
        %697 = vrot.lane.b32.xlu0 %v682, 32
        %v698 = vpop.permute.xlu0 %697
        %vm699 = vcmask 31744
        %v701 = vsel %vm699, %v371, %v501
        %v703 = vsel %vm699, %v372, %v503
        %v705 = vsel %vm699, %v373, %v505
        %v707 = vsel %vm699, %v374, %v507
        %v709 = vsel %vm699, %v375, %v509
        %v711 = vsel %vm699, %v376, %v511
        %v713 = vsel %vm699, %v377, %v513
        %v715 = vsel %vm699, %v378, %v515
        %vm716 = vcmask 64512
        %v718 = vsel %vm716, %v701, %v542
        %v720 = vsel %vm716, %v703, %v544
        %v722 = vsel %vm716, %v705, %v546
        %v724 = vsel %vm716, %v707, %v548
        %v726 = vsel %vm716, %v709, %v550
        %v728 = vsel %vm716, %v711, %v552
        %v730 = vsel %vm716, %v713, %v554
        %v732 = vsel %vm716, %v715, %v556
        %vm733 = vcmask 97280
        %v735 = vsel %vm733, %v718, %v563
        %v737 = vsel %vm733, %v720, %v565
        %v739 = vsel %vm733, %v722, %v567
        %v741 = vsel %vm733, %v724, %v569
        %v743 = vsel %vm733, %v726, %v571
        %v745 = vsel %vm733, %v728, %v573
        %v747 = vsel %vm733, %v730, %v575
        %v749 = vsel %vm733, %v732, %v577
        %vm750 = vcmask 130048
        %v752 = vsel %vm750, %v735, %v594
        %v754 = vsel %vm750, %v737, %v596
        %v756 = vsel %vm750, %v739, %v598
        %v758 = vsel %vm750, %v741, %v600
        %v760 = vsel %vm750, %v743, %v602
        %v762 = vsel %vm750, %v745, %v604
        %v764 = vsel %vm750, %v747, %v606
        %v766 = vsel %vm750, %v749, %v608
        %vm767 = vcmask 162816
        %v769 = vsel %vm767, %v752, %v613
        %v771 = vsel %vm767, %v754, %v615
        %v773 = vsel %vm767, %v756, %v617
        %v775 = vsel %vm767, %v758, %v619
        %v777 = vsel %vm767, %v760, %v621
        %v779 = vsel %vm767, %v762, %v623
        %v781 = vsel %vm767, %v764, %v625
        %v783 = vsel %vm767, %v766, %v627
        %vm784 = vcmask 195584
        %v786 = vsel %vm784, %v769, %v634
        %v788 = vsel %vm784, %v771, %v636
        %v790 = vsel %vm784, %v773, %v638
        %v792 = vsel %vm784, %v775, %v640
        %v794 = vsel %vm784, %v777, %v642
        %v796 = vsel %vm784, %v779, %v644
        %v798 = vsel %vm784, %v781, %v646
        %v800 = vsel %vm784, %v783, %v648
        %vm801 = vcmask 228352
        %v803 = vsel %vm801, %v786, %v665
        %v805 = vsel %vm801, %v788, %v667
        %v807 = vsel %vm801, %v790, %v669
        %v809 = vsel %vm801, %v792, %v671
        %v811 = vsel %vm801, %v794, %v673
        %v813 = vsel %vm801, %v796, %v675
        %v815 = vsel %vm801, %v798, %v677
        %v817 = vsel %vm801, %v800, %v679
        %vm818 = vcmask 261120
        %v820 = vsel %vm818, %v803, %v684
        %v822 = vsel %vm818, %v805, %v686
        %v824 = vsel %vm818, %v807, %v688
        %v826 = vsel %vm818, %v809, %v690
        %v828 = vsel %vm818, %v811, %v692
        %v830 = vsel %vm818, %v813, %v694
        %v832 = vsel %vm818, %v815, %v696
        %v834 = vsel %vm818, %v817, %v698
        %v835 = vld [vmem:[%s2] sm:$0xf]
        %v836 = vld [vmem:[%s2 + $0x4] sm:$0xf]
        %v837 = vld [vmem:[%s2 + $0x8] sm:$0xf]
        %v838 = vld [vmem:[%s2 + $0xc] sm:$0xf]
        %v839 = vld [vmem:[%s2 + $0x10] sm:$0x3]
        %v845 = vunpack.c.l.b16 %v835
        %v846 = vunpack.c.l.b16 %v836
        %v847 = vunpack.c.l.b16 %v837
        %v848 = vunpack.c.l.b16 %v838
        %v849 = vunpack.c.l.b16 %v839
        %v850 = vpack.c.b16 %v846, %v845
        %v851 = vpack.c.b16 %v848, %v847
        %v852 = vpack.c.b16 %v849, %v849
        %vm855 = vcmask 293888
        %v856 = vsel %vm855, %v820, 0
        %v858 = vsel %vm855, %v822, 0
        %v860 = vsel %vm855, %v824, 0
        %v862 = vsel %vm855, %v826, 0
        %v864 = vsel %vm855, %v828, 0
        %v866 = vsel %vm855, %v830, 0
        %v868 = vsel %vm855, %v832, 0
        %v870 = vsel %vm855, %v834, 0
        %vm872 = vcmask 1041408
        %v874 = vsel %vm872, %v852, 0
        %876 = vmatpush.bf16.msra.mxu0 0
        %877 = vmatpush.bf16.msra.mxu0 0
        %878 = vmatpush.bf16.msra.mxu0 0
        %879 = vmatpush.bf16.msra.mxu0 0
        %880 = vmatpush.bf16.msra.mxu0 0
        %881 = vmatpush.bf16.msra.mxu0 %v874
        %882 = vmatpush.bf16.msra.mxu0 %v851
        %883 = vmatpush.bf16.msra.mxu0 %v850
        %884 = vmatmul.bf16.gmra.mxu0 %v856
        %v885 = vpop.f32.mrf.mxu0
        %v886 = vadd.f32 0.0, %v885
        %v887 = vpop.f32.mrf.mxu0
        %v888 = vadd.f32 0.0, %v887
        %889 = vmatmul.bf16.gmra.mxu0 %v858
        %v890 = vpop.f32.mrf.mxu0
        %v891 = vadd.f32 0.0, %v890
        %v892 = vpop.f32.mrf.mxu0
        %v893 = vadd.f32 0.0, %v892
        %894 = vmatmul.bf16.gmra.mxu0 %v860
        %v895 = vpop.f32.mrf.mxu0
        %v896 = vadd.f32 0.0, %v895
        %v897 = vpop.f32.mrf.mxu0
        %v898 = vadd.f32 0.0, %v897
        %899 = vmatmul.bf16.gmra.mxu0 %v862
        %v900 = vpop.f32.mrf.mxu0
        %v901 = vadd.f32 0.0, %v900
        %v902 = vpop.f32.mrf.mxu0
        %v903 = vadd.f32 0.0, %v902
        %904 = vmatmul.bf16.gmra.mxu0 %v864
        %v905 = vpop.f32.mrf.mxu0
        %v906 = vadd.f32 0.0, %v905
        %v907 = vpop.f32.mrf.mxu0
        %v908 = vadd.f32 0.0, %v907
        %909 = vmatmul.bf16.gmra.mxu0 %v866
        %v910 = vpop.f32.mrf.mxu0
        %v911 = vadd.f32 0.0, %v910
        %v912 = vpop.f32.mrf.mxu0
        %v913 = vadd.f32 0.0, %v912
        %914 = vmatmul.bf16.gmra.mxu0 %v868
        %v915 = vpop.f32.mrf.mxu0
        %v916 = vadd.f32 0.0, %v915
        %v917 = vpop.f32.mrf.mxu0
        %v918 = vadd.f32 0.0, %v917
        %919 = vmatmul.bf16.gmra.mxu0 %v870
        %v920 = vpop.f32.mrf.mxu0
        %v921 = vadd.f32 0.0, %v920
        %v922 = vpop.f32.mrf.mxu0
        %v923 = vadd.f32 0.0, %v922
        %924 = vdwg.mxu0
        %v925 = vld [vmem:[%s3] sm:$0x1]
        %v926 = vperm.slane %v925, 0
        %v927 = vmul.f32 %v886, %v926
        %v928 = vmul.f32 %v888, %v926
        %v929 = vmul.f32 %v891, %v926
        %v930 = vmul.f32 %v893, %v926
        %v931 = vmul.f32 %v896, %v926
        %v932 = vmul.f32 %v898, %v926
        %v933 = vmul.f32 %v901, %v926
        %v934 = vmul.f32 %v903, %v926
        %v935 = vmul.f32 %v906, %v926
        %v936 = vmul.f32 %v908, %v926
        %v937 = vmul.f32 %v911, %v926
        %v938 = vmul.f32 %v913, %v926
        %v939 = vmul.f32 %v916, %v926
        %v940 = vmul.f32 %v918, %v926
        %v941 = vmul.f32 %v921, %v926
        %v942 = vmul.f32 %v923, %v926
        %v943 = vld [vmem:[%s3 + $0x1] sm:$0x1]
        %v944 = vperm.slane %v943, 0
        %v945 = vadd.f32 %v927, %v944
        %v946 = vadd.f32 %v928, %v944
        %v947 = vadd.f32 %v929, %v944
        %v948 = vadd.f32 %v930, %v944
        %v949 = vadd.f32 %v931, %v944
        %v950 = vadd.f32 %v932, %v944
        %v951 = vadd.f32 %v933, %v944
        %v952 = vadd.f32 %v934, %v944
        %v953 = vadd.f32 %v935, %v944
        %v954 = vadd.f32 %v936, %v944
        %v955 = vadd.f32 %v937, %v944
        %v956 = vadd.f32 %v938, %v944
        %v957 = vadd.f32 %v939, %v944
        %v958 = vadd.f32 %v940, %v944
        %v959 = vadd.f32 %v941, %v944
        %v960 = vadd.f32 %v942, %v944
        %v961 = vxor.u32 %v945, 2147483648
        %v962 = vxor.u32 %v946, 2147483648
        %v963 = vxor.u32 %v947, 2147483648
        %v964 = vxor.u32 %v948, 2147483648
        %v965 = vxor.u32 %v949, 2147483648
        %v966 = vxor.u32 %v950, 2147483648
        %v967 = vxor.u32 %v951, 2147483648
        %v968 = vxor.u32 %v952, 2147483648
        %v969 = vxor.u32 %v953, 2147483648
        %v970 = vxor.u32 %v954, 2147483648
        %v971 = vxor.u32 %v955, 2147483648
        %v972 = vxor.u32 %v956, 2147483648
        %v973 = vxor.u32 %v957, 2147483648
        %v974 = vxor.u32 %v958, 2147483648
        %v975 = vxor.u32 %v959, 2147483648
        %v976 = vxor.u32 %v960, 2147483648
        %v977 = vmul.f32 %v961, 1.442695
        %v978 = vpow.pop %v977
        %v979 = vmul.f32 %v962, 1.442695
        %v980 = vpow.pop %v979
        %v981 = vmul.f32 %v963, 1.442695
        %v982 = vpow.pop %v981
        %v983 = vmul.f32 %v964, 1.442695
        %v984 = vpow.pop %v983
        %v985 = vmul.f32 %v965, 1.442695
        %v986 = vpow.pop %v985
        %v987 = vmul.f32 %v966, 1.442695
        %v988 = vpow.pop %v987
        %v989 = vmul.f32 %v967, 1.442695
        %v990 = vpow.pop %v989
        %v991 = vmul.f32 %v968, 1.442695
        %v992 = vpow.pop %v991
        %v993 = vmul.f32 %v969, 1.442695
        %v994 = vpow.pop %v993
        %v995 = vmul.f32 %v970, 1.442695
        %v996 = vpow.pop %v995
        %v997 = vmul.f32 %v971, 1.442695
        %v998 = vpow.pop %v997
        %v999 = vmul.f32 %v972, 1.442695
        %v1000 = vpow.pop %v999
        %v1001 = vmul.f32 %v973, 1.442695
        %v1002 = vpow.pop %v1001
        %v1003 = vmul.f32 %v974, 1.442695
        %v1004 = vpow.pop %v1003
        %v1005 = vmul.f32 %v975, 1.442695
        %v1006 = vpow.pop %v1005
        %v1007 = vmul.f32 %v976, 1.442695
        %v1008 = vpow.pop %v1007
        %v1009 = vadd.f32 %v978, 1.0
        %v1010 = vadd.f32 %v980, 1.0
        %v1011 = vadd.f32 %v982, 1.0
        %v1012 = vadd.f32 %v984, 1.0
        %v1013 = vadd.f32 %v986, 1.0
        %v1014 = vadd.f32 %v988, 1.0
        %v1015 = vadd.f32 %v990, 1.0
        %v1016 = vadd.f32 %v992, 1.0
        %v1017 = vadd.f32 %v994, 1.0
        %v1018 = vadd.f32 %v996, 1.0
        %v1019 = vadd.f32 %v998, 1.0
        %v1020 = vadd.f32 %v1000, 1.0
        %v1021 = vadd.f32 %v1002, 1.0
        %v1022 = vadd.f32 %v1004, 1.0
        %v1023 = vadd.f32 %v1006, 1.0
        %v1024 = vadd.f32 %v1008, 1.0
        %v1025 = vrcp.pop %v1009
        %v1026 = vmul.f32 %v1009, %v1025
        %v1027 = vsub.f32 1.0, %v1026
        %v1028 = vmul.f32 %v1025, %v1027
        %v1029 = vadd.f32 %v1025, %v1028
        %vm1030 = vweird.f32 %v1009
        %vm1031 = vweird.f32 %v1025
        %vm1032 = vmor %vm1030, %vm1031
        %v1033 = vsel %vm1032, %v1025, %v1029
        %v1034 = vand.u32 2147483647, %v1009
        %vm1035 = vcmp.eq.f32.partialorder %v1034, 8.507059e+37
        %v1036 = vand.u32 %v1009, 2147483648
        %v1037 = vor.u32 1.1754944e-38, %v1036
        %v1038 = vsel %vm1035, %v1037, %v1033
        %v1039 = vmul.f32 1.0, %v1038
        %v1040 = vrcp.pop %v1010
        %v1041 = vmul.f32 %v1010, %v1040
        %v1042 = vsub.f32 1.0, %v1041
        %v1043 = vmul.f32 %v1040, %v1042
        %v1044 = vadd.f32 %v1040, %v1043
        %vm1045 = vweird.f32 %v1010
        %vm1046 = vweird.f32 %v1040
        %vm1047 = vmor %vm1045, %vm1046
        %v1048 = vsel %vm1047, %v1040, %v1044
        %v1049 = vand.u32 2147483647, %v1010
        %vm1050 = vcmp.eq.f32.partialorder %v1049, 8.507059e+37
        %v1051 = vand.u32 %v1010, 2147483648
        %v1052 = vor.u32 1.1754944e-38, %v1051
        %v1053 = vsel %vm1050, %v1052, %v1048
        %v1054 = vmul.f32 1.0, %v1053
        %v1055 = vrcp.pop %v1011
        %v1056 = vmul.f32 %v1011, %v1055
        %v1057 = vsub.f32 1.0, %v1056
        %v1058 = vmul.f32 %v1055, %v1057
        %v1059 = vadd.f32 %v1055, %v1058
        %vm1060 = vweird.f32 %v1011
        %vm1061 = vweird.f32 %v1055
        %vm1062 = vmor %vm1060, %vm1061
        %v1063 = vsel %vm1062, %v1055, %v1059
        %v1064 = vand.u32 2147483647, %v1011
        %vm1065 = vcmp.eq.f32.partialorder %v1064, 8.507059e+37
        %v1066 = vand.u32 %v1011, 2147483648
        %v1067 = vor.u32 1.1754944e-38, %v1066
        %v1068 = vsel %vm1065, %v1067, %v1063
        %v1069 = vmul.f32 1.0, %v1068
        %v1070 = vrcp.pop %v1012
        %v1071 = vmul.f32 %v1012, %v1070
        %v1072 = vsub.f32 1.0, %v1071
        %v1073 = vmul.f32 %v1070, %v1072
        %v1074 = vadd.f32 %v1070, %v1073
        %vm1075 = vweird.f32 %v1012
        %vm1076 = vweird.f32 %v1070
        %vm1077 = vmor %vm1075, %vm1076
        %v1078 = vsel %vm1077, %v1070, %v1074
        %v1079 = vand.u32 2147483647, %v1012
        %vm1080 = vcmp.eq.f32.partialorder %v1079, 8.507059e+37
        %v1081 = vand.u32 %v1012, 2147483648
        %v1082 = vor.u32 1.1754944e-38, %v1081
        %v1083 = vsel %vm1080, %v1082, %v1078
        %v1084 = vmul.f32 1.0, %v1083
        %v1085 = vrcp.pop %v1013
        %v1086 = vmul.f32 %v1013, %v1085
        %v1087 = vsub.f32 1.0, %v1086
        %v1088 = vmul.f32 %v1085, %v1087
        %v1089 = vadd.f32 %v1085, %v1088
        %vm1090 = vweird.f32 %v1013
        %vm1091 = vweird.f32 %v1085
        %vm1092 = vmor %vm1090, %vm1091
        %v1093 = vsel %vm1092, %v1085, %v1089
        %v1094 = vand.u32 2147483647, %v1013
        %vm1095 = vcmp.eq.f32.partialorder %v1094, 8.507059e+37
        %v1096 = vand.u32 %v1013, 2147483648
        %v1097 = vor.u32 1.1754944e-38, %v1096
        %v1098 = vsel %vm1095, %v1097, %v1093
        %v1099 = vmul.f32 1.0, %v1098
        %v1100 = vrcp.pop %v1014
        %v1101 = vmul.f32 %v1014, %v1100
        %v1102 = vsub.f32 1.0, %v1101
        %v1103 = vmul.f32 %v1100, %v1102
        %v1104 = vadd.f32 %v1100, %v1103
        %vm1105 = vweird.f32 %v1014
        %vm1106 = vweird.f32 %v1100
        %vm1107 = vmor %vm1105, %vm1106
        %v1108 = vsel %vm1107, %v1100, %v1104
        %v1109 = vand.u32 2147483647, %v1014
        %vm1110 = vcmp.eq.f32.partialorder %v1109, 8.507059e+37
        %v1111 = vand.u32 %v1014, 2147483648
        %v1112 = vor.u32 1.1754944e-38, %v1111
        %v1113 = vsel %vm1110, %v1112, %v1108
        %v1114 = vmul.f32 1.0, %v1113
        %v1115 = vrcp.pop %v1015
        %v1116 = vmul.f32 %v1015, %v1115
        %v1117 = vsub.f32 1.0, %v1116
        %v1118 = vmul.f32 %v1115, %v1117
        %v1119 = vadd.f32 %v1115, %v1118
        %vm1120 = vweird.f32 %v1015
        %vm1121 = vweird.f32 %v1115
        %vm1122 = vmor %vm1120, %vm1121
        %v1123 = vsel %vm1122, %v1115, %v1119
        %v1124 = vand.u32 2147483647, %v1015
        %vm1125 = vcmp.eq.f32.partialorder %v1124, 8.507059e+37
        %v1126 = vand.u32 %v1015, 2147483648
        %v1127 = vor.u32 1.1754944e-38, %v1126
        %v1128 = vsel %vm1125, %v1127, %v1123
        %v1129 = vmul.f32 1.0, %v1128
        %v1130 = vrcp.pop %v1016
        %v1131 = vmul.f32 %v1016, %v1130
        %v1132 = vsub.f32 1.0, %v1131
        %v1133 = vmul.f32 %v1130, %v1132
        %v1134 = vadd.f32 %v1130, %v1133
        %vm1135 = vweird.f32 %v1016
        %vm1136 = vweird.f32 %v1130
        %vm1137 = vmor %vm1135, %vm1136
        %v1138 = vsel %vm1137, %v1130, %v1134
        %v1139 = vand.u32 2147483647, %v1016
        %vm1140 = vcmp.eq.f32.partialorder %v1139, 8.507059e+37
        %v1141 = vand.u32 %v1016, 2147483648
        %v1142 = vor.u32 1.1754944e-38, %v1141
        %v1143 = vsel %vm1140, %v1142, %v1138
        %v1144 = vmul.f32 1.0, %v1143
        %v1145 = vrcp.pop %v1017
        %v1146 = vmul.f32 %v1017, %v1145
        %v1147 = vsub.f32 1.0, %v1146
        %v1148 = vmul.f32 %v1145, %v1147
        %v1149 = vadd.f32 %v1145, %v1148
        %vm1150 = vweird.f32 %v1017
        %vm1151 = vweird.f32 %v1145
        %vm1152 = vmor %vm1150, %vm1151
        %v1153 = vsel %vm1152, %v1145, %v1149
        %v1154 = vand.u32 2147483647, %v1017
        %vm1155 = vcmp.eq.f32.partialorder %v1154, 8.507059e+37
        %v1156 = vand.u32 %v1017, 2147483648
        %v1157 = vor.u32 1.1754944e-38, %v1156
        %v1158 = vsel %vm1155, %v1157, %v1153
        %v1159 = vmul.f32 1.0, %v1158
        %v1160 = vrcp.pop %v1018
        %v1161 = vmul.f32 %v1018, %v1160
        %v1162 = vsub.f32 1.0, %v1161
        %v1163 = vmul.f32 %v1160, %v1162
        %v1164 = vadd.f32 %v1160, %v1163
        %vm1165 = vweird.f32 %v1018
        %vm1166 = vweird.f32 %v1160
        %vm1167 = vmor %vm1165, %vm1166
        %v1168 = vsel %vm1167, %v1160, %v1164
        %v1169 = vand.u32 2147483647, %v1018
        %vm1170 = vcmp.eq.f32.partialorder %v1169, 8.507059e+37
        %v1171 = vand.u32 %v1018, 2147483648
        %v1172 = vor.u32 1.1754944e-38, %v1171
        %v1173 = vsel %vm1170, %v1172, %v1168
        %v1174 = vmul.f32 1.0, %v1173
        %v1175 = vrcp.pop %v1019
        %v1176 = vmul.f32 %v1019, %v1175
        %v1177 = vsub.f32 1.0, %v1176
        %v1178 = vmul.f32 %v1175, %v1177
        %v1179 = vadd.f32 %v1175, %v1178
        %vm1180 = vweird.f32 %v1019
        %vm1181 = vweird.f32 %v1175
        %vm1182 = vmor %vm1180, %vm1181
        %v1183 = vsel %vm1182, %v1175, %v1179
        %v1184 = vand.u32 2147483647, %v1019
        %vm1185 = vcmp.eq.f32.partialorder %v1184, 8.507059e+37
        %v1186 = vand.u32 %v1019, 2147483648
        %v1187 = vor.u32 1.1754944e-38, %v1186
        %v1188 = vsel %vm1185, %v1187, %v1183
        %v1189 = vmul.f32 1.0, %v1188
        %v1190 = vrcp.pop %v1020
        %v1191 = vmul.f32 %v1020, %v1190
        %v1192 = vsub.f32 1.0, %v1191
        %v1193 = vmul.f32 %v1190, %v1192
        %v1194 = vadd.f32 %v1190, %v1193
        %vm1195 = vweird.f32 %v1020
        %vm1196 = vweird.f32 %v1190
        %vm1197 = vmor %vm1195, %vm1196
        %v1198 = vsel %vm1197, %v1190, %v1194
        %v1199 = vand.u32 2147483647, %v1020
        %vm1200 = vcmp.eq.f32.partialorder %v1199, 8.507059e+37
        %v1201 = vand.u32 %v1020, 2147483648
        %v1202 = vor.u32 1.1754944e-38, %v1201
        %v1203 = vsel %vm1200, %v1202, %v1198
        %v1204 = vmul.f32 1.0, %v1203
        %v1205 = vrcp.pop %v1021
        %v1206 = vmul.f32 %v1021, %v1205
        %v1207 = vsub.f32 1.0, %v1206
        %v1208 = vmul.f32 %v1205, %v1207
        %v1209 = vadd.f32 %v1205, %v1208
        %vm1210 = vweird.f32 %v1021
        %vm1211 = vweird.f32 %v1205
        %vm1212 = vmor %vm1210, %vm1211
        %v1213 = vsel %vm1212, %v1205, %v1209
        %v1214 = vand.u32 2147483647, %v1021
        %vm1215 = vcmp.eq.f32.partialorder %v1214, 8.507059e+37
        %v1216 = vand.u32 %v1021, 2147483648
        %v1217 = vor.u32 1.1754944e-38, %v1216
        %v1218 = vsel %vm1215, %v1217, %v1213
        %v1219 = vmul.f32 1.0, %v1218
        %v1220 = vrcp.pop %v1022
        %v1221 = vmul.f32 %v1022, %v1220
        %v1222 = vsub.f32 1.0, %v1221
        %v1223 = vmul.f32 %v1220, %v1222
        %v1224 = vadd.f32 %v1220, %v1223
        %vm1225 = vweird.f32 %v1022
        %vm1226 = vweird.f32 %v1220
        %vm1227 = vmor %vm1225, %vm1226
        %v1228 = vsel %vm1227, %v1220, %v1224
        %v1229 = vand.u32 2147483647, %v1022
        %vm1230 = vcmp.eq.f32.partialorder %v1229, 8.507059e+37
        %v1231 = vand.u32 %v1022, 2147483648
        %v1232 = vor.u32 1.1754944e-38, %v1231
        %v1233 = vsel %vm1230, %v1232, %v1228
        %v1234 = vmul.f32 1.0, %v1233
        %v1235 = vrcp.pop %v1023
        %v1236 = vmul.f32 %v1023, %v1235
        %v1237 = vsub.f32 1.0, %v1236
        %v1238 = vmul.f32 %v1235, %v1237
        %v1239 = vadd.f32 %v1235, %v1238
        %vm1240 = vweird.f32 %v1023
        %vm1241 = vweird.f32 %v1235
        %vm1242 = vmor %vm1240, %vm1241
        %v1243 = vsel %vm1242, %v1235, %v1239
        %v1244 = vand.u32 2147483647, %v1023
        %vm1245 = vcmp.eq.f32.partialorder %v1244, 8.507059e+37
        %v1246 = vand.u32 %v1023, 2147483648
        %v1247 = vor.u32 1.1754944e-38, %v1246
        %v1248 = vsel %vm1245, %v1247, %v1243
        %v1249 = vmul.f32 1.0, %v1248
        %v1250 = vrcp.pop %v1024
        %v1251 = vmul.f32 %v1024, %v1250
        %v1252 = vsub.f32 1.0, %v1251
        %v1253 = vmul.f32 %v1250, %v1252
        %v1254 = vadd.f32 %v1250, %v1253
        %vm1255 = vweird.f32 %v1024
        %vm1256 = vweird.f32 %v1250
        %vm1257 = vmor %vm1255, %vm1256
        %v1258 = vsel %vm1257, %v1250, %v1254
        %v1259 = vand.u32 2147483647, %v1024
        %vm1260 = vcmp.eq.f32.partialorder %v1259, 8.507059e+37
        %v1261 = vand.u32 %v1024, 2147483648
        %v1262 = vor.u32 1.1754944e-38, %v1261
        %v1263 = vsel %vm1260, %v1262, %v1258
        %v1264 = vmul.f32 1.0, %v1263
        %v1265 = vmul.f32 %v945, %v1039
        %v1266 = vmul.f32 %v946, %v1054
        %v1267 = vmul.f32 %v947, %v1069
        %v1268 = vmul.f32 %v948, %v1084
        %v1269 = vmul.f32 %v949, %v1099
        %v1270 = vmul.f32 %v950, %v1114
        %v1271 = vmul.f32 %v951, %v1129
        %v1272 = vmul.f32 %v952, %v1144
        %v1273 = vmul.f32 %v953, %v1159
        %v1274 = vmul.f32 %v954, %v1174
        %v1275 = vmul.f32 %v955, %v1189
        %v1276 = vmul.f32 %v956, %v1204
        %v1277 = vmul.f32 %v957, %v1219
        %v1278 = vmul.f32 %v958, %v1234
        %v1279 = vmul.f32 %v959, %v1249
        %v1280 = vmul.f32 %v960, %v1264
        %1281 = vst [vmem:[%s270] sm:$0xff] %v1265
        %1282 = vst [vmem:[%s270 + $0x8] sm:$0xff] %v1266
        %1283 = vst [vmem:[%s270 + $0x10] sm:$0xff] %v1267
        %1284 = vst [vmem:[%s270 + $0x18] sm:$0xff] %v1268
        %1285 = vst [vmem:[%s270 + $0x20] sm:$0xff] %v1269
        %1286 = vst [vmem:[%s270 + $0x28] sm:$0xff] %v1270
        %1287 = vst [vmem:[%s270 + $0x30] sm:$0xff] %v1271
        %1288 = vst [vmem:[%s270 + $0x38] sm:$0xff] %v1272
        %1289 = vst [vmem:[%s270 + $0x40] sm:$0xff] %v1273
        %1290 = vst [vmem:[%s270 + $0x48] sm:$0xff] %v1274
        %1291 = vst [vmem:[%s270 + $0x50] sm:$0xff] %v1275
        %1292 = vst [vmem:[%s270 + $0x58] sm:$0xff] %v1276
        %1293 = vst [vmem:[%s270 + $0x60] sm:$0xff] %v1277
        %1294 = vst [vmem:[%s270 + $0x68] sm:$0xff] %v1278
        %1295 = vst [vmem:[%s270 + $0x70] sm:$0xff] %v1279
        %1296 = vst [vmem:[%s270 + $0x78] sm:$0xff] %v1280
        %s1297 = sand.u32 %s142, 1
        %s1298 = scalar_lea.sflag [#allocation3], %s1297
        %s1299 = sand.u32 %s142, 1
        %s1300 = smul.addr %s1299, 128
        %s1301 = scalar_lea.vmem [#allocation2], %s1300
        // Predicated region
        $region37: #{tpu_custom_call.1} parent=35 // pred_check
          %p1302 = pneg %p152
        $region38: #{tpu_custom_call.1} parent=35 // pred_check_branch
          %1304 = sbr.rel (%p1302) target = $region40
        $region39: #{tpu_custom_call.1} parent=35 // pred_region
          %s1305 = smul.u32 8, %s23
          %1307 = vsyncadd %s1298, 0
          %s1308 = smul.addr %s1305, 2
          %s1309 = smul.addr %s22, 32
          %s1310 = sadd.s32 %s1308, %s1309
          %s1311 = smul.addr %s1310, 8
          %s1312 = scalar_lea.hbm %s4, %s1311
          %s1313 = sshll.u32 %s1301, 4
          %s1314 = int_to_ptr.vmem [resolvable:$true] %s1313
          %s1315 = sshll.u32 %s1312, 4
          %s1316 = int_to_ptr.hbm [resolvable:$true] %s1315
          %1321 = dma.vmem_to_hbm [thread:$0]  %s1314, 2048, %s1316, %s1298, 128, 128, 8
        $region40: #{tpu_custom_call.1} parent=35 // pred_fallthru
          _
      $region36: #{tpu_custom_call.1} parent=5 // pred_fallthru
        _
      %p1322 = scmp.le.s32.totalorder 2, %s13
      // Predicated region
      $region41: #{tpu_custom_call.1} parent=5 // pred_check
        %p1323 = pneg %p1322
      $region42: #{tpu_custom_call.1} parent=5 // pred_check_branch
        %1325 = sbr.rel (%p1323) target = $region44
      $region43: #{tpu_custom_call.1} parent=5 // pred_region
        %s1326 = ssub.s32 %s13, 2
        // Predicated region
        $region45: #{tpu_custom_call.1} parent=43 // pred_check
          %p1327 = pneg %p158
        $region46: #{tpu_custom_call.1} parent=43 // pred_check_branch
          %1329 = sbr.rel (%p1327) target = $region48
        $region47: #{tpu_custom_call.1} parent=43 // pred_region
          %s1330 = sand.u32 %s143, 1
          %s1331 = scalar_lea.sflag [#allocation3], %s1330
          %s1332 = sand.u32 %s143, 1
          %s1333 = smul.addr %s1332, 128
          %s1334 = scalar_lea.vmem [#allocation2], %s1333
          %1336 = dma.done %s1331, 2048
        $region48: #{tpu_custom_call.1} parent=43 // pred_fallthru
          _
      $region44: #{tpu_custom_call.1} parent=5 // pred_fallthru
        _
    $region6: #{tpu_custom_call.1} parent=1 // loop_footer
      %s17 = sadd.s32 1, %s13
    $region7: #{tpu_custom_call.1} parent=1 // loop_footer_branch
      %12 = sbr.rel target = $region3
    $region8: #{tpu_custom_call.1} parent=1 // loop_exit
      _
    %1337 = vsyncpa [#allocation3], 1
    %s1338 = scalar_lea.sflag [#allocation3], 1
    %1339 = vsyncpa %s1338, 1

</llo_original>
